<compile_context>
chip_gen: v6e
topology: v6e:2x2x1
jax: 0.10.0
libtpu: 0.0.40
codegen_flags: <defaults>
</compile_context>

<pallas_src>
import jax
import jax.numpy as jnp
from jax.experimental import pallas as pl
from jax.experimental.pallas import tpu as pltpu


def _cdiv(a, b):
    return (a + b - 1) // b


def _round_up(v, m):
    return _cdiv(v, m) * m


def _round_down(v, m):
    return (v // m) * m


def _sublane_multiple(dtype):
    # min second-minor tile: 8 (f32) / 16 (bf16) / 32 (int8, fp8)
    return max(8, 32 // jnp.dtype(dtype).itemsize)


def _tensorcores_per_device():
    """Best-effort: 2 for megacore / dual-TC chips, 1 for v5e/v6e."""
    try:
        kind = jax.devices()[0].device_kind.lower()
    except Exception:
        return 1
    if "lite" in kind or "v5e" in kind or "v6e" in kind:
        return 1
    # v3/v4/v5p/v7x-style parts: enabling the split on a 1-TC chip is harmless
    # (one extra tiny output block), missing it on a 2-TC chip costs ~2x.
    return 2


def _vmem_capacity_bytes():
    try:
        cap = int(pltpu.get_tpu_info().vmem_capacity_bytes)
        if cap > 0:
            return cap
    except Exception:
        pass
    return 64 * 1024 * 1024  # conservative default (v7x per-TensorCore VMEM)


def _make_kernel(M, N, bm, bn, tiles_per_core, need_row_mask, need_col_mask):
    """Kernel closure over static tiling constants (no SMEM scalars needed)."""

    def kernel(x_ref, t_ref, out_ref, acc_ref):
        c = pl.program_id(0)  # core split      ("parallel", outermost)
        j = pl.program_id(1)  # lane tiles       ("parallel")
        i = pl.program_id(2)  # row tiles        ("arbitrary", reduction, innermost)

        @pl.when(i == 0)
        def _init():
            acc_ref[...] = jnp.zeros_like(acc_ref)

        diff = x_ref[...].astype(jnp.float32) - t_ref[...].astype(jnp.float32)
        dsq = diff * diff  # (bm, bn) f32, VPU only

        # Mask rows/lanes past the true (M, N) extent.  Partial last blocks and
        # the (possibly) fully-out-of-range dummy tile of an uneven core split
        # contribute exactly zero.  Static flags: interior-aligned shapes pay
        # nothing.
        if need_row_mask or need_col_mask:
            mask = None
            if need_row_mask:
                row0 = (c * tiles_per_core + i) * bm
                rows = row0 + jax.lax.broadcasted_iota(jnp.int32, (bm, bn), 0)
                mask = rows < M
            if need_col_mask:
                col0 = j * bn
                cols = col0 + jax.lax.broadcasted_iota(jnp.int32, (bm, bn), 1)
                cmask = cols < N
                mask = cmask if mask is None else jnp.logical_and(mask, cmask)
            dsq = jnp.where(mask, dsq, 0.0)

        # Fold the row tile onto the (8, bn) accumulator: groups of 8 rows line
        # up with sublane tiling, so this reshape is layout-preserving and the
        # reduce over axis 0 is plain VPU adds across vregs (no XLU).
        acc_ref[...] += dsq.reshape(bm // 8, 8, bn).sum(axis=0)

        @pl.when(i == tiles_per_core - 1)
        def _epilogue():
            # Fold lanes (8, bn) -> (8, 128): vreg-aligned 128-lane slices +
            # VPU adds, once per output block, so the HBM writeback per block
            # is 4 KiB regardless of bn.
            acc = acc_ref[...]
            folded = acc[:, 0:128]
            for k in range(1, bn // 128):
                folded = folded + acc[:, k * 128:(k + 1) * 128]
            out_ref[...] = folded

    return kernel


def content_loss_forward(x, target, weight, *, min_bytes_for_kernel=256 * 1024,
                         block_m=None, block_n=None, n_split=None,
                         interpret=False):
    """Returns (out, loss) with out == x (clone is a no-op for JAX arrays) and
    loss == mean((x * weight - target * weight) ** 2)."""
    assert x.shape == target.shape, (x.shape, target.shape)
    w = jnp.asarray(weight, jnp.float32)  # works for python floats and tracers

    # 2-D view.  Any factorization of the element count gives the same MSE, so
    # prefer (B*C, H*W) for 4-D feature maps and shift factors of 2 from N to M
    # when M is too small for an efficient (8, 128) tiling.
    total = x.size
    if x.ndim >= 2:
        N = int(x.shape[-1]) * int(x.shape[-2])
    else:
        N = total
    M = total // N
    sub = max(_sublane_multiple(x.dtype), _sublane_multiple(target.dtype))
    while M < sub and N % 2 == 0 and N >= 256:
        M *= 2
        N //= 2

    x2 = x.reshape(M, N)
    t2 = target.reshape(M, N)  # keep native dtype in HBM, cast in-kernel

    item = x2.dtype.itemsize + t2.dtype.itemsize
    total_bytes = M * N * item

    # Tiny / degenerate inputs: fixed pallas_call + grid overhead dominates and
    # the (8, 128) tiling constraints cannot be met cleanly -> fused XLA reduce.
    if M < sub or N < 128 or total_bytes < min_bytes_for_kernel:
        diff = x2.astype(jnp.float32) - t2.astype(jnp.float32)
        loss = jnp.mean(diff * diff) * (w * w)
        return x, loss

    # ---- per-generation VMEM budget / tile sizing --------------------------
    cap = _vmem_capacity_bytes()
    budget = min(int(cap * 0.4), 48 * 1024 * 1024)   # double-buffered inputs + acc
    vmem_limit = int(cap * 0.8)

    # Lane (N) tile: full rows when they fit, capped at 32K lanes so the
    # accumulator and input tiles stay balanced for very wide feature maps.
    if block_n is None:
        bn = min(_round_down(N, 128), 32 * 1024)
    else:
        bn = _round_down(int(block_n), 128)
        if bn < 128:
            bn = 128
        bn = min(bn, _round_down(N, 128))
    bn = max(bn, 128)

    # Row (M) tile from what is left of the budget after the f32 accumulator.
    acc_bytes = 8 * bn * 4
    avail = max(0, budget - acc_bytes)
    bm_budget = max(sub, _round_down(avail // (2 * bn * item), sub))
    if block_m is None:
        bm = bm_budget
    else:
        bm = max(sub, _round_up(int(block_m), sub))
    bm = max(sub, min(bm, _round_down(M, sub)))  # never exceed the array extent

    grid_m = _cdiv(M, bm)
    grid_n = _cdiv(N, bn)

    # 2-TensorCore split along the row tiles (leading "parallel" axis).  Odd
    # tile counts get a dummy tile whose index is clamped and whose rows are
    # fully masked, so the split engages regardless of parity.
    if n_split is None:
        n_split_eff = 2 if (_tensorcores_per_device() >= 2 and grid_m >= 2) else 1
    else:
        n_split_eff = max(1, int(n_split))
    n_split_eff = min(n_split_eff, grid_m)
    tiles_per_core = _cdiv(grid_m, n_split_eff)

    need_row_mask = (n_split_eff * tiles_per_core * bm) > M
    need_col_mask = (grid_n * bn) > N

    def in_index_map(c, j, i):
        rb = jnp.minimum(c * tiles_per_core + i, grid_m - 1)  # clamp dummy tiles
        return (rb, j)

    kernel = _make_kernel(M, N, bm, bn, tiles_per_core,
                          need_row_mask, need_col_mask)

    out_shape = jax.ShapeDtypeStruct((n_split_eff, grid_n, 8, 128), jnp.float32)
    cost = pl.CostEstimate(
        flops=3 * M * N, transcendentals=0,
        bytes_accessed=M * N * item + n_split_eff * grid_n * 8 * 128 * 4)

    partials = pl.pallas_call(
        kernel,
        out_shape=out_shape,
        grid_spec=pltpu.PrefetchScalarGridSpec(
            num_scalar_prefetch=0,
            grid=(n_split_eff, grid_n, tiles_per_core),
            in_specs=[
                pl.BlockSpec((bm, bn), in_index_map),
                pl.BlockSpec((bm, bn), in_index_map),
            ],
            out_specs=pl.BlockSpec((None, None, 8, 128),
                                   lambda c, j, i: (c, j, 0, 0)),
            scratch_shapes=[pltpu.VMEM((8, bn), jnp.float32)],
        ),
        compiler_params=pltpu.CompilerParams(
            dimension_semantics=("parallel", "parallel", "arbitrary"),
            vmem_limit_bytes=vmem_limit,
        ),
        cost_estimate=cost,
        interpret=interpret,
    )(x2, t2)

    loss = jnp.sum(partials) * (w * w) * jnp.float32(1.0 / (M * N))

    # input.clone() -> pass the (immutable) input straight through.
    return x, loss


class ContentLossPallas:
    """Mirror of the PyTorch Content_Loss module (forward only)."""

    def __init__(self, target, weight):
        self.weight = weight
        # PyTorch stores target.detach() * weight; we keep the raw target and
        # fold weight**2 into the final scale (mathematically identical MSE).
        self.target = jnp.asarray(target)

    def __call__(self, x, **kwargs):
        out, loss = content_loss_forward(x, self.target, self.weight, **kwargs)
        self.loss = loss
        return out

    # TODO(synk): backward() relies on torch autograd; use jax.grad over
    # content_loss_forward's loss output instead (not implemented here).


if __name__ == "__main__":
    key = jax.random.PRNGKey(0)
    ks = jax.random.split(key, 8)

    def ref_loss(x, t, w):
        xf = x.astype(jnp.float32)
        tf = t.astype(jnp.float32)
        return jnp.mean((xf * w - tf * w) ** 2)

    # 1) Aligned small feature map (B=2, C=4, H=W=16), kernel path forced.
    x1 = jax.random.normal(ks[0], (2, 4, 16, 16), dtype=jnp.float32)
    t1 = jax.random.normal(ks[1], (2, 4, 16, 16), dtype=jnp.float32)
    out1, loss1 = content_loss_forward(x1, t1, 1.0, min_bytes_for_kernel=0)
    jax.block_until_ready(out1)
    loss1 = jax.block_until_ready(loss1)
    assert jnp.allclose(out1, x1), "pass-through output mismatch (test 1)"
    assert jnp.allclose(loss1, ref_loss(x1, t1, 1.0), rtol=1e-5, atol=1e-6), (
        loss1, ref_loss(x1, t1, 1.0))

    # 2) Unaligned shape -> partial blocks + in-kernel row/lane masks.
    x2 = jax.random.normal(ks[2], (1, 13, 11, 17), dtype=jnp.float32)
    t2 = jax.random.normal(ks[3], (1, 13, 11, 17), dtype=jnp.float32)
    out2, loss2 = content_loss_forward(x2, t2, 1.5, min_bytes_for_kernel=0)
    jax.block_until_ready(out2)
    loss2 = jax.block_until_ready(loss2)
    assert jnp.allclose(out2, x2), "pass-through output mismatch (test 2)"
    assert jnp.allclose(loss2, ref_loss(x2, t2, 1.5), rtol=1e-5, atol=1e-6), (
        loss2, ref_loss(x2, t2, 1.5))

    # 3) Forced multi-tile grid + 2-way core split with an odd row-tile count
    #    (exercises the clamped, fully-masked dummy tile).
    x3 = jax.random.normal(ks[4], (3, 8, 16, 16), dtype=jnp.float32)
    t3 = jax.random.normal(ks[5], (3, 8, 16, 16), dtype=jnp.float32)
    out3, loss3 = content_loss_forward(x3, t3, 0.75, min_bytes_for_kernel=0,
                                       block_m=8, block_n=128, n_split=2)
    jax.block_until_ready(out3)
    loss3 = jax.block_until_ready(loss3)
    assert jnp.allclose(out3, x3), "pass-through output mismatch (test 3)"
    assert jnp.allclose(loss3, ref_loss(x3, t3, 0.75), rtol=1e-5, atol=1e-6), (
        loss3, ref_loss(x3, t3, 0.75))

    # 4) Tiny input through the module wrapper -> fused jnp fallback path.
    x4 = jax.random.normal(ks[6], (1, 3, 5, 7), dtype=jnp.float32)
    t4 = jax.random.normal(ks[7], (1, 3, 5, 7), dtype=jnp.float32)
    module = ContentLossPallas(t4, 2.0)
    out4 = jax.block_until_ready(module(x4))
    loss4 = jax.block_until_ready(module.loss)
    assert jnp.allclose(out4, x4), "pass-through output mismatch (test 4)"
    assert jnp.allclose(loss4, ref_loss(x4, t4, 2.0), rtol=1e-5, atol=1e-6), (
        loss4, ref_loss(x4, t4, 2.0))

    print("KERNEL_OK")
</pallas_src>

<mosaic_0001>
module attributes {stable_mosaic.version = 11 : i64} {
  func.func @kernel(%arg0: i32, %arg1: i32, %arg2: i32, %arg3: memref<8x256xf32, #tpu.memory_space<vmem>>, %arg4: memref<8x256xf32, #tpu.memory_space<vmem>>, %arg5: memref<1x1x8x128xf32, #tpu.memory_space<vmem>>, %arg6: memref<8x256xf32, #tpu.memory_space<vmem>>) attributes {dimension_semantics = [#tpu.dimension_semantics<parallel>, #tpu.dimension_semantics<parallel>, #tpu.dimension_semantics<arbitrary>], iteration_bounds = array<i64: 1, 1, 1>, scalar_prefetch = 0 : i64, scratch_operands = 1 : i64, tpu.core_type = #tpu.core_type<tc>, window_params = [{transform_indices = @transform_0, window_bounds = array<i64: 8, 256>}, {transform_indices = @transform_1, window_bounds = array<i64: 8, 256>}, {transform_indices = @transform_2, window_bounds = array<i64: 1, 1, 8, 128>}]} {
    %c0_i32 = arith.constant 0 : i32
    %0 = arith.cmpi eq, %arg2, %c0_i32 : i32
    %1 = arith.extui %0 : i1 to i32
    %c0_i32_0 = arith.constant 0 : i32
    %2 = arith.cmpi ne, %1, %c0_i32_0 : i32
    scf.if %2 {
      %cst_10 = arith.constant 0.000000e+00 : f32
      %15 = vector.broadcast %cst_10 : f32 to vector<8x256xf32>
      %c0_11 = arith.constant 0 : index
      %c0_12 = arith.constant 0 : index
      %16 = vector.load %arg6[%c0_11, %c0_12] : memref<8x256xf32, #tpu.memory_space<vmem>>, vector<8x256xf32>
      tpu.vector_store %arg6[%c0_11, %c0_12], %15 {strides = array<i32>} : memref<8x256xf32, #tpu.memory_space<vmem>>, vector<8x256xf32>,
    } else {
    }
    %c0 = arith.constant 0 : index
    %c0_1 = arith.constant 0 : index
    %3 = vector.load %arg3[%c0, %c0_1] : memref<8x256xf32, #tpu.memory_space<vmem>>, vector<8x256xf32>
    %c0_2 = arith.constant 0 : index
    %c0_3 = arith.constant 0 : index
    %4 = vector.load %arg4[%c0_2, %c0_3] : memref<8x256xf32, #tpu.memory_space<vmem>>, vector<8x256xf32>
    %5 = arith.subf %3, %4 : vector<8x256xf32>
    %6 = arith.mulf %5, %5 : vector<8x256xf32>
    %c0_4 = arith.constant 0 : index
    %c0_5 = arith.constant 0 : index
    %7 = vector.load %arg6[%c0_4, %c0_5] : memref<8x256xf32, #tpu.memory_space<vmem>>, vector<8x256xf32>
    %8 = vector.shape_cast %6 : vector<8x256xf32> to vector<1x8x256xf32>
    %cst = arith.constant dense<0.000000e+00> : vector<8x256xf32>
    %9 = vector.multi_reduction <add>, %8, %cst [0] : vector<1x8x256xf32> to vector<8x256xf32>
    %10 = arith.addf %7, %9 : vector<8x256xf32>
    %c0_6 = arith.constant 0 : index
    %c0_7 = arith.constant 0 : index
    %11 = vector.load %arg6[%c0_6, %c0_7] : memref<8x256xf32, #tpu.memory_space<vmem>>, vector<8x256xf32>
    tpu.vector_store %arg6[%c0_6, %c0_7], %10 {strides = array<i32>} : memref<8x256xf32, #tpu.memory_space<vmem>>, vector<8x256xf32>,
    %c0_i32_8 = arith.constant 0 : i32
    %12 = arith.cmpi eq, %arg2, %c0_i32_8 : i32
    %13 = arith.extui %12 : i1 to i32
    %c0_i32_9 = arith.constant 0 : i32
    %14 = arith.cmpi ne, %13, %c0_i32_9 : i32
    scf.if %14 {
      %c0_10 = arith.constant 0 : index
      %c0_11 = arith.constant 0 : index
      %15 = vector.load %arg6[%c0_10, %c0_11] : memref<8x256xf32, #tpu.memory_space<vmem>>, vector<8x256xf32>
      %16 = vector.extract_strided_slice %15 {offsets = [0, 0], sizes = [8, 128], strides = [1, 1]} : vector<8x256xf32> to vector<8x128xf32>
      %17 = vector.extract_strided_slice %15 {offsets = [0, 128], sizes = [8, 128], strides = [1, 1]} : vector<8x256xf32> to vector<8x128xf32>
      %18 = arith.addf %16, %17 : vector<8x128xf32>
      %c0_12 = arith.constant 0 : index
      %c0_13 = arith.constant 0 : index
      %c0_14 = arith.constant 0 : index
      %c0_15 = arith.constant 0 : index
      %19 = vector.load %arg5[%c0_12, %c0_13, %c0_14, %c0_15] : memref<1x1x8x128xf32, #tpu.memory_space<vmem>>, vector<1x1x8x128xf32>
      %20 = vector.shape_cast %19 : vector<1x1x8x128xf32> to vector<8x128xf32>
      %21 = vector.shape_cast %18 : vector<8x128xf32> to vector<1x1x8x128xf32>
      tpu.vector_store %arg5[%c0_12, %c0_13, %c0_14, %c0_15], %21 {strides = array<i32>} : memref<1x1x8x128xf32, #tpu.memory_space<vmem>>, vector<1x1x8x128xf32>,
    } else {
    }
    return
  }
  func.func @transform_0(%arg0: i32, %arg1: i32, %arg2: i32) -> (i32, i32) {
    %c1_i32 = arith.constant 1 : i32
    %0 = arith.muli %arg0, %c1_i32 : i32
    %1 = arith.addi %0, %arg2 : i32
    %c0_i32 = arith.constant 0 : i32
    %2 = arith.minsi %1, %c0_i32 : i32
    %c0_i32_0 = arith.constant 0 : i32
    return %2, %arg1 : i32, i32
  }
  func.func @transform_1(%arg0: i32, %arg1: i32, %arg2: i32) -> (i32, i32) {
    %c1_i32 = arith.constant 1 : i32
    %0 = arith.muli %arg0, %c1_i32 : i32
    %1 = arith.addi %0, %arg2 : i32
    %c0_i32 = arith.constant 0 : i32
    %2 = arith.minsi %1, %c0_i32 : i32
    %c0_i32_0 = arith.constant 0 : i32
    return %2, %arg1 : i32, i32
  }
  func.func @transform_2(%arg0: i32, %arg1: i32, %arg2: i32) -> (i32, i32, i32, i32) {
    %c0_i32 = arith.constant 0 : i32
    %c0_i32_0 = arith.constant 0 : i32
    %c0_i32_1 = arith.constant 0 : i32
    return %arg0, %arg1, %c0_i32, %c0_i32_0 : i32, i32, i32, i32
  }
}

</mosaic_0001>

<llo_original>
// kernel: tpu_custom_call.1
$region0: #{tpu_custom_call.1}
  #allocation0 [shape = 'u32[]', space=smem, size = 0x4, offset = 0x4, fixed_abs, tag = 'smem constant byte address 0x4 - core index']
  #allocation1 [shape = 'u32[144,128]{1,0:T(1,128)}', space=vmem, size = 0x12000, scoped, tag = 'internal scratch']
  #allocation2 [shape = 'f32[8,256]{1,0:T(8,128)}', space=vmem, size = 0x2000, scoped, tag = 'scratch operand']
  %s0 = inlined_call_operand.hbm [shape: f32[8,256], index: 0, kind: input, shape index: {}]
  %s1 = inlined_call_operand.hbm [shape: f32[8,256], index: 1, kind: input, shape index: {}]
  %s2 = inlined_call_operand.hbm [shape: f32[1,1,8,128], index: 2, kind: output, shape index: {}]
  %s3 = sld [smem:[#allocation0]]
  $region34: #{tpu_custom_call.1} parent=0
    _
  %s5 = ssub.s32 1, %s3
  %s6 = scalar_select 0, %s5, %s3
  $region1: #{tpu_custom_call.1} parent=0
    #allocation3 [shape = 'u8[8192]{0}', space=vmem, size = 0x2000, scoped, tag = 'input window, operand 0, single buffered']
    #allocation4 [shape = 's32[1]{0}', space=sflag, size = 0x4, scoped, tag = 'scoped memory for tpu_custom_call.1']
    #allocation5 [shape = 's32[1]{0}', space=sflag, size = 0x4, scoped, tag = 'scoped memory for tpu_custom_call.1']
    #allocation6 [shape = 'u8[8192]{0}', space=vmem, size = 0x2000, scoped, tag = 'input window, operand 1, single buffered']
    #allocation7 [shape = 's32[1]{0}', space=sflag, size = 0x4, scoped, tag = 'scoped memory for tpu_custom_call.1']
    #allocation8 [shape = 'u8[4096]{0}', space=vmem, size = 0x1000, scoped, tag = 'output window, operand 0, single buffered']
    %7 = vsyncpa [#allocation4], 0
    %8 = vsyncpa [#allocation7], 0
    %9 = vsyncpa [#allocation5], 0
    // Predicated region
    $region2: #{tpu_custom_call.1} parent=1 // pred_check
      _
    $region3: #{tpu_custom_call.1} parent=1 // pred_check_branch
      %11 = sbr.rel (0) target = $region5
    $region4: #{tpu_custom_call.1} parent=1 // pred_region
      %s12 = sadd.s32 0, 0
      %p13 = scmp.lt.s32.totalorder %s12, 0
      %s14 = scalar_select %p13, %s12, 0
      %s16 = ssub.s32 256, 256
      %17 = vsyncadd [#allocation4], %s16
      %s18 = smul.addr %s14, 2
      %s19 = smul.addr %s18, 128
      %s20 = scalar_lea.hbm %s0, %s19
      %s22 = sshll.u32 [#allocation3], 4
      %s23 = int_to_ptr.vmem [resolvable:$true] %s22
      %25 = dma.hbm_to_vmem [thread:$0]  %s20, 256, %s23, [#allocation4]
    $region5: #{tpu_custom_call.1} parent=1 // pred_fallthru
      _
    // Predicated region
    $region6: #{tpu_custom_call.1} parent=1 // pred_check
      _
    $region7: #{tpu_custom_call.1} parent=1 // pred_check_branch
      %27 = sbr.rel (0) target = $region9
    $region8: #{tpu_custom_call.1} parent=1 // pred_region
      %s28 = sadd.s32 0, 0
      %p29 = scmp.lt.s32.totalorder %s28, 0
      %s30 = scalar_select %p29, %s28, 0
      %s32 = ssub.s32 256, 256
      %33 = vsyncadd [#allocation7], %s32
      %s34 = smul.addr %s30, 2
      %s35 = smul.addr %s34, 128
      %s36 = scalar_lea.hbm %s1, %s35
      %s38 = sshll.u32 [#allocation6], 4
      %s39 = int_to_ptr.vmem [resolvable:$true] %s38
      %41 = dma.hbm_to_vmem [thread:$0]  %s36, 256, %s39, [#allocation7]
    $region9: #{tpu_custom_call.1} parent=1 // pred_fallthru
      _
    // Predicated region
    $region10: #{tpu_custom_call.1} parent=1 // pred_check
      _
    $region11: #{tpu_custom_call.1} parent=1 // pred_check_branch
      %43 = sbr.rel (0) target = $region13
    $region12: #{tpu_custom_call.1} parent=1 // pred_region
      %44 = dma.done [#allocation4], 256
    $region13: #{tpu_custom_call.1} parent=1 // pred_fallthru
      _
    // Predicated region
    $region14: #{tpu_custom_call.1} parent=1 // pred_check
      _
    $region15: #{tpu_custom_call.1} parent=1 // pred_check_branch
      %46 = sbr.rel (0) target = $region17
    $region16: #{tpu_custom_call.1} parent=1 // pred_region
      %47 = dma.done [#allocation7], 256
    $region17: #{tpu_custom_call.1} parent=1 // pred_fallthru
      _
    %s48 = sadd.s32 0, 0
    %p49 = scmp.lt.s32.totalorder %s48, 0
    %s50 = scalar_select %p49, %s48, 0
    %s51 = sadd.s32 0, 0
    %p52 = scmp.lt.s32.totalorder %s51, 0
    %s53 = scalar_select %p52, %s51, 0
    %p54 = scmp.eq.s32.totalorder 0, 0
    // Predicated region
    $region18: #{tpu_custom_call.1} parent=1 // pred_check
      %p55 = pneg %p54
    $region19: #{tpu_custom_call.1} parent=1 // pred_check_branch
      %57 = sbr.rel (%p55) target = $region21
    $region20: #{tpu_custom_call.1} parent=1 // pred_region
      %58 = vst [vmem:[#allocation2] sm:$0xff] 0.0
      %59 = vst [vmem:[#allocation2 + $0x8] sm:$0xff] 0.0
    $region21: #{tpu_custom_call.1} parent=1 // pred_fallthru
      _
    %v60 = vld [vmem:[#allocation3] sm:$0xff]
    %v61 = vld [vmem:[#allocation3 + $0x8] sm:$0xff]
    %v62 = vld [vmem:[#allocation6] sm:$0xff]
    %v63 = vld [vmem:[#allocation6 + $0x8] sm:$0xff]
    %v64 = vsub.f32 %v60, %v62
    %v65 = vsub.f32 %v61, %v63
    %v66 = vmul.f32 %v64, %v64
    %v67 = vmul.f32 %v65, %v65
    %v68 = vld [vmem:[#allocation2] sm:$0xff]
    %v69 = vld [vmem:[#allocation2 + $0x8] sm:$0xff]
    %v70 = vadd.f32 %v66, 0.0
    %v71 = vadd.f32 %v67, 0.0
    %v72 = vadd.f32 %v68, %v70
    %v73 = vadd.f32 %v69, %v71
    %74 = vst [vmem:[#allocation2] sm:$0xff] %v72
    %75 = vst [vmem:[#allocation2 + $0x8] sm:$0xff] %v73
    // Predicated region
    $region22: #{tpu_custom_call.1} parent=1 // pred_check
      %p76 = pneg %p54
    $region23: #{tpu_custom_call.1} parent=1 // pred_check_branch
      %78 = sbr.rel (%p76) target = $region25
    $region24: #{tpu_custom_call.1} parent=1 // pred_region
      %v79 = vld [vmem:[#allocation2] sm:$0xff]
      %v80 = vld [vmem:[#allocation2 + $0x8] sm:$0xff]
      %v81 = vadd.f32 %v79, %v80
      %82 = vst [vmem:[#allocation8] sm:$0xff] %v81
    $region25: #{tpu_custom_call.1} parent=1 // pred_fallthru
      _
    // Predicated region
    $region26: #{tpu_custom_call.1} parent=1 // pred_check
      _
    $region27: #{tpu_custom_call.1} parent=1 // pred_check_branch
      %84 = sbr.rel (0) target = $region29
    $region28: #{tpu_custom_call.1} parent=1 // pred_region
      %s86 = ssub.s32 128, 128
      %87 = vsyncadd [#allocation5], %s86
      %s89 = sshll.u32 [#allocation8], 4
      %s90 = int_to_ptr.vmem [resolvable:$true] %s89
      %92 = dma.vmem_to_hbm [thread:$0]  %s90, 128, %s2, [#allocation5]
    $region29: #{tpu_custom_call.1} parent=1 // pred_fallthru
      _
    // Predicated region
    $region30: #{tpu_custom_call.1} parent=1 // pred_check
      _
    $region31: #{tpu_custom_call.1} parent=1 // pred_check_branch
      %94 = sbr.rel (0) target = $region33
    $region32: #{tpu_custom_call.1} parent=1 // pred_region
      %95 = dma.done [#allocation5], 128
    $region33: #{tpu_custom_call.1} parent=1 // pred_fallthru
      _
    %96 = vsyncpa [#allocation4], 1
    %97 = vsyncpa [#allocation7], 1
    %98 = vsyncpa [#allocation5], 1

</llo_original>
